<compile_context>
chip_gen: v7x
topology: tpu7x:2x2x1
jax: 0.10.0
libtpu: 0.0.40
codegen_flags: <defaults>
</compile_context>

<pallas_src>
import jax
import jax.numpy as jnp
from jax.experimental import pallas as pl
from jax.experimental.pallas import tpu as pltpu


def _round_up(n, m):
    return ((n + m - 1) // m) * m


def _subnet_kernel(x_ref, gamma_ref, beta_ref,
                   w1_ref, b1_ref, w2_ref, b2_ref, w3_ref, b3_ref,
                   out_ref):
    eps = 1e-5
    x = x_ref[...]                                           # (N, Fp) f32

    # ---- BatchNorm1d (training mode, biased variance), folded affine ----
    mean = jnp.mean(x, axis=0, keepdims=True)                # (1, Fp)
    xc = x - mean                                            # reuse for var & norm
    var = jnp.mean(xc * xc, axis=0, keepdims=True)
    scale = gamma_ref[...] * jax.lax.rsqrt(var + eps)        # (1, Fp) cheap row math
    normed = xc * scale + beta_ref[...]                      # 2 full-width VPU ops

    # ---- Dropout: identity (eval mode) ----
    h = normed.astype(jnp.bfloat16)

    # ---- Linear 1 + ReLU (bf16 operands, f32 accumulate) ----
    y1 = jnp.dot(h, w1_ref[...], preferred_element_type=jnp.float32)
    y1 = jnp.maximum(y1 + b1_ref[...], 0.0)

    # ---- Linear 2 + ReLU ----
    y2 = jnp.dot(y1.astype(jnp.bfloat16), w2_ref[...],
                 preferred_element_type=jnp.float32)
    y2 = jnp.maximum(y2 + b2_ref[...], 0.0)

    # ---- Linear 3 + ReLU ----
    y3 = jnp.dot(y2.astype(jnp.bfloat16), w3_ref[...],
                 preferred_element_type=jnp.float32)
    y3 = jnp.maximum(y3 + b3_ref[...], 0.0)

    out_ref[...] = y3.astype(out_ref.dtype)


def subnet_forward(x, params):
    """x: (N, in_size) float32. params: dict of gamma/beta/w1..b3 (f32)."""
    N, in_size = x.shape
    hidden = params["w1"].shape[1]

    LANE = 128
    Fp = _round_up(in_size, LANE)   # lane-dense feature dim
    Hp = _round_up(hidden, LANE)    # lane-dense hidden / output dim

    pf = Fp - in_size
    ph = Hp - hidden

    # Zero-padding is exact: padded features normalize to 0 (gamma/beta padded
    # with 0), padded weight rows/cols and biases contribute exactly 0.
    xp    = jnp.pad(x.astype(jnp.float32), ((0, 0), (0, pf)))
    gamma = jnp.pad(params["gamma"], ((0, 0), (0, pf)))
    beta  = jnp.pad(params["beta"],  ((0, 0), (0, pf)))
    w1 = jnp.pad(params["w1"], ((0, pf), (0, ph))).astype(jnp.bfloat16)
    w2 = jnp.pad(params["w2"], ((0, ph), (0, ph))).astype(jnp.bfloat16)
    w3 = jnp.pad(params["w3"], ((0, ph), (0, ph))).astype(jnp.bfloat16)
    b1 = jnp.pad(params["b1"], ((0, 0), (0, ph)))
    b2 = jnp.pad(params["b2"], ((0, 0), (0, ph)))
    b3 = jnp.pad(params["b3"], ((0, 0), (0, ph)))

    args = (xp, gamma, beta, w1, b1, w2, b2, w3, b3)

    # Small problem: no grid; every operand fully resident in VMEM.
    vmem_spec = pl.BlockSpec(memory_space=pltpu.VMEM)

    out_padded = pl.pallas_call(
        _subnet_kernel,
        out_shape=jax.ShapeDtypeStruct((N, Hp), jnp.float32),
        in_specs=[vmem_spec] * len(args),
        out_specs=vmem_spec,
    )(*args)

    return out_padded[:, :hidden]


def init_params(key, in_size, hidden_size):
    """Mirror nn.Linear's U(-1/sqrt(fan_in), +1/sqrt(fan_in)) and BN gamma=1, beta=0."""
    ks = jax.random.split(key, 6)

    def lin(kw, kb, fan_in, fan_out):
        bound = 1.0 / jnp.sqrt(fan_in)
        w = jax.random.uniform(kw, (fan_in, fan_out), jnp.float32, -bound, bound)
        b = jax.random.uniform(kb, (1, fan_out), jnp.float32, -bound, bound)
        return w, b

    w1, b1 = lin(ks[0], ks[1], in_size, hidden_size)
    w2, b2 = lin(ks[2], ks[3], hidden_size, hidden_size)
    w3, b3 = lin(ks[4], ks[5], hidden_size, hidden_size)

    return {
        "gamma": jnp.ones((1, in_size), jnp.float32),
        "beta": jnp.zeros((1, in_size), jnp.float32),
        "w1": w1, "b1": b1,
        "w2": w2, "b2": b2,
        "w3": w3, "b3": b3,
    }


def _reference_bf16(x, p):
    """Matches the kernel's numerics: f32 BN (folded, rsqrt), bf16 matmul operands."""
    eps = 1e-5
    mean = jnp.mean(x, axis=0, keepdims=True)
    xc = x - mean
    var = jnp.mean(xc * xc, axis=0, keepdims=True)
    h = xc * (p["gamma"] * jax.lax.rsqrt(var + eps)) + p["beta"]

    def lin_relu(h, w, b):
        y = jnp.dot(h.astype(jnp.bfloat16), w.astype(jnp.bfloat16),
                    preferred_element_type=jnp.float32) + b
        return jnp.maximum(y, 0.0)

    h = lin_relu(h, p["w1"], p["b1"])
    h = lin_relu(h, p["w2"], p["b2"])
    h = lin_relu(h, p["w3"], p["b3"])
    return h


if __name__ == "__main__":
    key = jax.random.PRNGKey(0)
    k_x, k_p = jax.random.split(key)

    batch, in_size, hidden_size = 8, 16, 32
    x = jax.random.normal(k_x, (batch, in_size), jnp.float32)
    params = init_params(k_p, in_size, hidden_size)

    out = subnet_forward(x, params)
    out = jax.block_until_ready(out)

    ref = _reference_bf16(x, params)
    assert out.shape == (batch, hidden_size)
    assert jnp.allclose(out, ref, atol=1e-3, rtol=1e-3), "mismatch vs reference"

    print("KERNEL_OK")
</pallas_src>

<mosaic_0001>
module attributes {stable_mosaic.version = 11 : i64} {
  func.func @_subnet_kernel(%arg0: memref<8x128xf32, #tpu.memory_space<vmem>>, %arg1: memref<1x128xf32, #tpu.memory_space<vmem>>, %arg2: memref<1x128xf32, #tpu.memory_space<vmem>>, %arg3: memref<128x128xbf16, #tpu.memory_space<vmem>>, %arg4: memref<1x128xf32, #tpu.memory_space<vmem>>, %arg5: memref<128x128xbf16, #tpu.memory_space<vmem>>, %arg6: memref<1x128xf32, #tpu.memory_space<vmem>>, %arg7: memref<128x128xbf16, #tpu.memory_space<vmem>>, %arg8: memref<1x128xf32, #tpu.memory_space<vmem>>, %arg9: memref<8x128xf32, #tpu.memory_space<vmem>>) attributes {dimension_semantics = [], scalar_prefetch = 0 : i64, scratch_operands = 0 : i64, tpu.core_type = #tpu.core_type<tc>} {
    %c0 = arith.constant 0 : index
    %c0_0 = arith.constant 0 : index
    %0 = vector.load %arg0[%c0, %c0_0] : memref<8x128xf32, #tpu.memory_space<vmem>>, vector<8x128xf32>
    %cst = arith.constant dense<0.000000e+00> : vector<128xf32>
    %1 = vector.multi_reduction <add>, %0, %cst [0] : vector<8x128xf32> to vector<128xf32>
    %2 = vector.shape_cast %1 : vector<128xf32> to vector<1x128xf32>
    %cst_1 = arith.constant 8.000000e+00 : f32
    %3 = vector.broadcast %cst_1 : f32 to vector<1x128xf32>
    %4 = arith.divf %2, %3 : vector<1x128xf32>
    %5 = vector.broadcast %4 : vector<1x128xf32> to vector<8x128xf32>
    %6 = arith.subf %0, %5 : vector<8x128xf32>
    %7 = arith.mulf %6, %6 : vector<8x128xf32>
    %cst_2 = arith.constant dense<0.000000e+00> : vector<128xf32>
    %8 = vector.multi_reduction <add>, %7, %cst_2 [0] : vector<8x128xf32> to vector<128xf32>
    %9 = vector.shape_cast %8 : vector<128xf32> to vector<1x128xf32>
    %cst_3 = arith.constant 8.000000e+00 : f32
    %10 = vector.broadcast %cst_3 : f32 to vector<1x128xf32>
    %11 = arith.divf %9, %10 : vector<1x128xf32>
    %c0_4 = arith.constant 0 : index
    %c0_5 = arith.constant 0 : index
    %12 = vector.load %arg1[%c0_4, %c0_5] : memref<1x128xf32, #tpu.memory_space<vmem>>, vector<1x128xf32>
    %cst_6 = arith.constant 9.99999974E-6 : f32
    %13 = vector.broadcast %cst_6 : f32 to vector<1x128xf32>
    %14 = arith.addf %11, %13 : vector<1x128xf32>
    %15 = math.rsqrt %14 : vector<1x128xf32>
    %16 = arith.mulf %12, %15 : vector<1x128xf32>
    %17 = vector.broadcast %16 : vector<1x128xf32> to vector<8x128xf32>
    %18 = arith.mulf %6, %17 : vector<8x128xf32>
    %c0_7 = arith.constant 0 : index
    %c0_8 = arith.constant 0 : index
    %19 = vector.load %arg2[%c0_7, %c0_8] : memref<1x128xf32, #tpu.memory_space<vmem>>, vector<1x128xf32>
    %20 = vector.broadcast %19 : vector<1x128xf32> to vector<8x128xf32>
    %21 = arith.addf %18, %20 : vector<8x128xf32>
    %22 = arith.truncf %21 : vector<8x128xf32> to vector<8x128xbf16>
    %c0_9 = arith.constant 0 : index
    %c0_10 = arith.constant 0 : index
    %23 = vector.load %arg3[%c0_9, %c0_10] : memref<128x128xbf16, #tpu.memory_space<vmem>>, vector<128x128xbf16>
    %cst_11 = arith.constant dense<0.000000e+00> : vector<8x128xf32>
    %24 = tpu.matmul %22, %23, %cst_11 {dimension_numbers = #tpu.dot_dimension_numbers<[1], [0], [0], [1], [0, 0, 1, 1], [], []>} : vector<8x128xbf16>, vector<128x128xbf16>, vector<8x128xf32> -> vector<8x128xf32>
    %c0_12 = arith.constant 0 : index
    %c0_13 = arith.constant 0 : index
    %25 = vector.load %arg4[%c0_12, %c0_13] : memref<1x128xf32, #tpu.memory_space<vmem>>, vector<1x128xf32>
    %26 = vector.broadcast %25 : vector<1x128xf32> to vector<8x128xf32>
    %27 = arith.addf %24, %26 : vector<8x128xf32>
    %cst_14 = arith.constant 0.000000e+00 : f32
    %28 = vector.broadcast %cst_14 : f32 to vector<8x128xf32>
    %29 = arith.maximumf %27, %28 : vector<8x128xf32>
    %30 = arith.truncf %29 : vector<8x128xf32> to vector<8x128xbf16>
    %c0_15 = arith.constant 0 : index
    %c0_16 = arith.constant 0 : index
    %31 = vector.load %arg5[%c0_15, %c0_16] : memref<128x128xbf16, #tpu.memory_space<vmem>>, vector<128x128xbf16>
    %cst_17 = arith.constant dense<0.000000e+00> : vector<8x128xf32>
    %32 = tpu.matmul %30, %31, %cst_17 {dimension_numbers = #tpu.dot_dimension_numbers<[1], [0], [0], [1], [0, 0, 1, 1], [], []>} : vector<8x128xbf16>, vector<128x128xbf16>, vector<8x128xf32> -> vector<8x128xf32>
    %c0_18 = arith.constant 0 : index
    %c0_19 = arith.constant 0 : index
    %33 = vector.load %arg6[%c0_18, %c0_19] : memref<1x128xf32, #tpu.memory_space<vmem>>, vector<1x128xf32>
    %34 = vector.broadcast %33 : vector<1x128xf32> to vector<8x128xf32>
    %35 = arith.addf %32, %34 : vector<8x128xf32>
    %cst_20 = arith.constant 0.000000e+00 : f32
    %36 = vector.broadcast %cst_20 : f32 to vector<8x128xf32>
    %37 = arith.maximumf %35, %36 : vector<8x128xf32>
    %38 = arith.truncf %37 : vector<8x128xf32> to vector<8x128xbf16>
    %c0_21 = arith.constant 0 : index
    %c0_22 = arith.constant 0 : index
    %39 = vector.load %arg7[%c0_21, %c0_22] : memref<128x128xbf16, #tpu.memory_space<vmem>>, vector<128x128xbf16>
    %cst_23 = arith.constant dense<0.000000e+00> : vector<8x128xf32>
    %40 = tpu.matmul %38, %39, %cst_23 {dimension_numbers = #tpu.dot_dimension_numbers<[1], [0], [0], [1], [0, 0, 1, 1], [], []>} : vector<8x128xbf16>, vector<128x128xbf16>, vector<8x128xf32> -> vector<8x128xf32>
    %c0_24 = arith.constant 0 : index
    %c0_25 = arith.constant 0 : index
    %41 = vector.load %arg8[%c0_24, %c0_25] : memref<1x128xf32, #tpu.memory_space<vmem>>, vector<1x128xf32>
    %42 = vector.broadcast %41 : vector<1x128xf32> to vector<8x128xf32>
    %43 = arith.addf %40, %42 : vector<8x128xf32>
    %cst_26 = arith.constant 0.000000e+00 : f32
    %44 = vector.broadcast %cst_26 : f32 to vector<8x128xf32>
    %45 = arith.maximumf %43, %44 : vector<8x128xf32>
    %c0_27 = arith.constant 0 : index
    %c0_28 = arith.constant 0 : index
    %46 = vector.load %arg9[%c0_27, %c0_28] : memref<8x128xf32, #tpu.memory_space<vmem>>, vector<8x128xf32>
    tpu.vector_store %arg9[%c0_27, %c0_28], %45 {strides = array<i32>} : memref<8x128xf32, #tpu.memory_space<vmem>>, vector<8x128xf32>,
    return
  }
}

</mosaic_0001>

<llo_original>
// kernel: tpu_custom_call.1
$region0: #{tpu_custom_call.1}
  #allocation0 [shape = 'u32[]', space=smem, size = 0x4, offset = 0x4, fixed_abs, tag = 'smem constant byte address 0x4 - core index']
  #allocation1 [shape = 'u32[144,128]{1,0:T(1,128)}', space=vmem, size = 0x12000, scoped, tag = 'internal scratch']
  %s0 = inlined_call_operand.hbm [shape: f32[8,128], index: 0, kind: input, shape index: {}]
  %s1 = inlined_call_operand.vmem [shape: f32[1,128], index: 1, kind: input, shape index: {}]
  %s2 = inlined_call_operand.vmem [shape: f32[1,128], index: 2, kind: input, shape index: {}]
  %s3 = inlined_call_operand.hbm [shape: bf16[128,128], index: 3, kind: input, shape index: {}]
  %s4 = inlined_call_operand.vmem [shape: f32[1,128], index: 4, kind: input, shape index: {}]
  %s5 = inlined_call_operand.hbm [shape: bf16[128,128], index: 5, kind: input, shape index: {}]
  %s6 = inlined_call_operand.vmem [shape: f32[1,128], index: 6, kind: input, shape index: {}]
  %s7 = inlined_call_operand.hbm [shape: bf16[128,128], index: 7, kind: input, shape index: {}]
  %s8 = inlined_call_operand.vmem [shape: f32[1,128], index: 8, kind: input, shape index: {}]
  %s9 = inlined_call_operand.hbm [shape: f32[8,128], index: 9, kind: output, shape index: {}]
  %s10 = sld [smem:[#allocation0]]
  $region62: #{tpu_custom_call.1} parent=0
    _
  %s12 = ssub.s32 1, %s10
  %s13 = scalar_select 0, %s12, %s10
  $region1: #{tpu_custom_call.1} parent=0
    #allocation2 [shape = 'u8[4096]{0}', space=vmem, size = 0x1000, scoped, tag = 'input window, operand 0, single buffered']
    #allocation3 [shape = 's32[1]{0}', space=sflag, size = 0x4, scoped, tag = 'scoped memory for tpu_custom_call.1']
    #allocation4 [shape = 's32[1]{0}', space=sflag, size = 0x4, scoped, tag = 'scoped memory for tpu_custom_call.1']
    #allocation5 [shape = 'u8[32768]{0}', space=vmem, size = 0x8000, scoped, tag = 'input window, operand 3, single buffered']
    #allocation6 [shape = 's32[1]{0}', space=sflag, size = 0x4, scoped, tag = 'scoped memory for tpu_custom_call.1']
    #allocation7 [shape = 'u8[32768]{0}', space=vmem, size = 0x8000, scoped, tag = 'input window, operand 5, single buffered']
    #allocation8 [shape = 'u8[32768]{0}', space=vmem, size = 0x8000, scoped, tag = 'input window, operand 7, single buffered']
    #allocation9 [shape = 's32[1]{0}', space=sflag, size = 0x4, scoped, tag = 'scoped memory for tpu_custom_call.1']
    #allocation10 [shape = 'u8[4096]{0}', space=vmem, size = 0x1000, scoped, tag = 'output window, operand 0, single buffered']
    %14 = vsyncpa [#allocation3], 0
    %15 = vsyncpa [#allocation6], 0
    %16 = vsyncpa [#allocation9], 0
    %17 = vsyncpa [#allocation4], 0
    // Predicated region
    $region2: #{tpu_custom_call.1} parent=1 // pred_check
      _
    $region3: #{tpu_custom_call.1} parent=1 // pred_check_branch
      %19 = sbr.rel (0) target = $region5
    $region4: #{tpu_custom_call.1} parent=1 // pred_region
      %s21 = ssub.s32 128, 128
      %22 = vsyncadd [#allocation3], %s21
      %s24 = sshll.u32 [#allocation2], 4
      %s25 = int_to_ptr.vmem [resolvable:$true] %s24
      %27 = dma.hbm_to_vmem [thread:$0]  %s0, 128, %s25, [#allocation3]
    $region5: #{tpu_custom_call.1} parent=1 // pred_fallthru
      _
    // Predicated region
    $region6: #{tpu_custom_call.1} parent=1 // pred_check
      _
    $region7: #{tpu_custom_call.1} parent=1 // pred_check_branch
      %29 = sbr.rel (0) target = $region9
    $region8: #{tpu_custom_call.1} parent=1 // pred_region
      _
    $region9: #{tpu_custom_call.1} parent=1 // pred_fallthru
      _
    // Predicated region
    $region10: #{tpu_custom_call.1} parent=1 // pred_check
      _
    $region11: #{tpu_custom_call.1} parent=1 // pred_check_branch
      %31 = sbr.rel (0) target = $region13
    $region12: #{tpu_custom_call.1} parent=1 // pred_region
      _
    $region13: #{tpu_custom_call.1} parent=1 // pred_fallthru
      _
    // Predicated region
    $region14: #{tpu_custom_call.1} parent=1 // pred_check
      _
    $region15: #{tpu_custom_call.1} parent=1 // pred_check_branch
      %33 = sbr.rel (0) target = $region17
    $region16: #{tpu_custom_call.1} parent=1 // pred_region
      %s35 = ssub.s32 1024, 1024
      %36 = vsyncadd [#allocation6], %s35
      %s37 = sshll.u32 [#allocation5], 4
      %s38 = int_to_ptr.vmem [resolvable:$true] %s37
      %43 = dma.hbm_to_vmem [thread:$0]  %s3, 1024, %s38, [#allocation6], 64, 64, 4
    $region17: #{tpu_custom_call.1} parent=1 // pred_fallthru
      _
    // Predicated region
    $region18: #{tpu_custom_call.1} parent=1 // pred_check
      _
    $region19: #{tpu_custom_call.1} parent=1 // pred_check_branch
      %45 = sbr.rel (0) target = $region21
    $region20: #{tpu_custom_call.1} parent=1 // pred_region
      _
    $region21: #{tpu_custom_call.1} parent=1 // pred_fallthru
      _
    // Predicated region
    $region22: #{tpu_custom_call.1} parent=1 // pred_check
      _
    $region23: #{tpu_custom_call.1} parent=1 // pred_check_branch
      %47 = sbr.rel (0) target = $region25
    $region24: #{tpu_custom_call.1} parent=1 // pred_region
      %s49 = ssub.s32 1024, 1024
      %50 = vsyncadd [#allocation6], %s49
      %s51 = sshll.u32 [#allocation7], 4
      %s52 = int_to_ptr.vmem [resolvable:$true] %s51
      %57 = dma.hbm_to_vmem [thread:$0]  %s5, 1024, %s52, [#allocation6], 64, 64, 4
    $region25: #{tpu_custom_call.1} parent=1 // pred_fallthru
      _
    // Predicated region
    $region26: #{tpu_custom_call.1} parent=1 // pred_check
      _
    $region27: #{tpu_custom_call.1} parent=1 // pred_check_branch
      %59 = sbr.rel (0) target = $region29
    $region28: #{tpu_custom_call.1} parent=1 // pred_region
      _
    $region29: #{tpu_custom_call.1} parent=1 // pred_fallthru
      _
    // Predicated region
    $region30: #{tpu_custom_call.1} parent=1 // pred_check
      _
    $region31: #{tpu_custom_call.1} parent=1 // pred_check_branch
      %61 = sbr.rel (0) target = $region33
    $region32: #{tpu_custom_call.1} parent=1 // pred_region
      %s63 = ssub.s32 1024, 1024
      %64 = vsyncadd [#allocation9], %s63
      %s65 = sshll.u32 [#allocation8], 4
      %s66 = int_to_ptr.vmem [resolvable:$true] %s65
      %71 = dma.hbm_to_vmem [thread:$0]  %s7, 1024, %s66, [#allocation9], 64, 64, 4
    $region33: #{tpu_custom_call.1} parent=1 // pred_fallthru
      _
    // Predicated region
    $region34: #{tpu_custom_call.1} parent=1 // pred_check
      _
    $region35: #{tpu_custom_call.1} parent=1 // pred_check_branch
      %73 = sbr.rel (0) target = $region37
    $region36: #{tpu_custom_call.1} parent=1 // pred_region
      _
    $region37: #{tpu_custom_call.1} parent=1 // pred_fallthru
      _
    // Predicated region
    $region38: #{tpu_custom_call.1} parent=1 // pred_check
      _
    $region39: #{tpu_custom_call.1} parent=1 // pred_check_branch
      %75 = sbr.rel (0) target = $region41
    $region40: #{tpu_custom_call.1} parent=1 // pred_region
      %76 = dma.done [#allocation3], 128
    $region41: #{tpu_custom_call.1} parent=1 // pred_fallthru
      _
    // Predicated region
    $region42: #{tpu_custom_call.1} parent=1 // pred_check
      _
    $region43: #{tpu_custom_call.1} parent=1 // pred_check_branch
      %78 = sbr.rel (0) target = $region45
    $region44: #{tpu_custom_call.1} parent=1 // pred_region
      %79 = dma.done [#allocation6], 1024
    $region45: #{tpu_custom_call.1} parent=1 // pred_fallthru
      _
    // Predicated region
    $region46: #{tpu_custom_call.1} parent=1 // pred_check
      _
    $region47: #{tpu_custom_call.1} parent=1 // pred_check_branch
      %81 = sbr.rel (0) target = $region49
    $region48: #{tpu_custom_call.1} parent=1 // pred_region
      %82 = dma.done [#allocation6], 1024
    $region49: #{tpu_custom_call.1} parent=1 // pred_fallthru
      _
    // Predicated region
    $region50: #{tpu_custom_call.1} parent=1 // pred_check
      _
    $region51: #{tpu_custom_call.1} parent=1 // pred_check_branch
      %84 = sbr.rel (0) target = $region53
    $region52: #{tpu_custom_call.1} parent=1 // pred_region
      %85 = dma.done [#allocation9], 1024
    $region53: #{tpu_custom_call.1} parent=1 // pred_fallthru
      _
    %v87 = vld [vmem:[#allocation2] sm:$0xff]
    %v88 = vrot.slane %v87, 4
    %v89 = vadd.f32 %v87, %v88
    %v90 = vrot.slane %v89, 2
    %v91 = vadd.f32 %v89, %v90
    %v92 = vrot.slane %v91, 1
    %v93 = vadd.f32 %v91, %v92
    %v94 = vrcp.pop 8.0
    %v95 = vmul.f32 %v93, %v94
    %v96 = vsub.f32 %v87, %v95
    %v97 = vmul.f32 %v96, %v96
    %v98 = vrot.slane %v97, 4
    %v99 = vadd.f32 %v97, %v98
    %v100 = vrot.slane %v99, 2
    %v101 = vadd.f32 %v99, %v100
    %v102 = vrot.slane %v101, 1
    %v103 = vadd.f32 %v101, %v102
    %v104 = vmul.f32 %v103, %v94
    %v105 = vld [vmem:[%s1] sm:$0x1]
    %v106 = vadd.f32 %v104, 1e-05
    %v107 = vrsqrt.pop %v106
    %v108 = vmul.f32 %v105, %v107
    %v110 = vlaneseq
    %v111 = vshrl.u32 %v110, 7
    %v112 = vsub.s32 0, %v111
    %v113 = vrot.slane %v108, %v112
    %v115 = vmul.f32 %v96, %v113
    %v116 = vld [vmem:[%s2] sm:$0x1]
    %v118 = vlaneseq
    %v119 = vshrl.u32 %v118, 7
    %v120 = vsub.s32 0, %v119
    %v121 = vrot.slane %v116, %v120
    %v123 = vadd.f32 %v115, %v121
    %v124 = vpack.c.bf16 %v123, %v123
    %v125 = vld [vmem:[#allocation5] sm:$0xf]
    %v126 = vld [vmem:[#allocation5 + $0x4] sm:$0xf]
    %v127 = vld [vmem:[#allocation5 + $0x8] sm:$0xf]
    %v128 = vld [vmem:[#allocation5 + $0xc] sm:$0xf]
    %v129 = vld [vmem:[#allocation5 + $0x10] sm:$0xf]
    %v130 = vld [vmem:[#allocation5 + $0x14] sm:$0xf]
    %v131 = vld [vmem:[#allocation5 + $0x18] sm:$0xf]
    %v132 = vld [vmem:[#allocation5 + $0x1c] sm:$0xf]
    %v133 = vld [vmem:[#allocation5 + $0x20] sm:$0xf]
    %v134 = vld [vmem:[#allocation5 + $0x24] sm:$0xf]
    %v135 = vld [vmem:[#allocation5 + $0x28] sm:$0xf]
    %v136 = vld [vmem:[#allocation5 + $0x2c] sm:$0xf]
    %v137 = vld [vmem:[#allocation5 + $0x30] sm:$0xf]
    %v138 = vld [vmem:[#allocation5 + $0x34] sm:$0xf]
    %v139 = vld [vmem:[#allocation5 + $0x38] sm:$0xf]
    %v140 = vld [vmem:[#allocation5 + $0x3c] sm:$0xf]
    %v141 = vld [vmem:[%s4] sm:$0x1]
    %v143 = vlaneseq
    %v144 = vshrl.u32 %v143, 7
    %v145 = vsub.s32 0, %v144
    %v146 = vrot.slane %v141, %v145
    %v164 = vunpack.c.l.b16 %v125
    %v165 = vunpack.c.l.b16 %v126
    %v166 = vunpack.c.l.b16 %v127
    %v167 = vunpack.c.l.b16 %v128
    %v168 = vunpack.c.l.b16 %v129
    %v169 = vunpack.c.l.b16 %v130
    %v170 = vunpack.c.l.b16 %v131
    %v171 = vunpack.c.l.b16 %v132
    %v172 = vunpack.c.l.b16 %v133
    %v173 = vunpack.c.l.b16 %v134
    %v174 = vunpack.c.l.b16 %v135
    %v175 = vunpack.c.l.b16 %v136
    %v176 = vunpack.c.l.b16 %v137
    %v177 = vunpack.c.l.b16 %v138
    %v178 = vunpack.c.l.b16 %v139
    %v179 = vunpack.c.l.b16 %v140
    %v180 = vpack.c.b16 %v165, %v164
    %v181 = vpack.c.b16 %v167, %v166
    %v182 = vpack.c.b16 %v169, %v168
    %v183 = vpack.c.b16 %v171, %v170
    %v184 = vpack.c.b16 %v173, %v172
    %v185 = vpack.c.b16 %v175, %v174
    %v186 = vpack.c.b16 %v177, %v176
    %v187 = vpack.c.b16 %v179, %v178
    %196 = vmatprep.subr.bf16.mxu0 0
    %197 = vmatpush1.bf16.msra.mxu0 %v180
    %198 = vmatprep.subr.bf16.mxu0 0
    %199 = vmatpush1.bf16.msra.mxu0 %v181
    %200 = vmatprep.subr.bf16.mxu0 0
    %201 = vmatpush1.bf16.msra.mxu0 %v182
    %202 = vmatprep.subr.bf16.mxu0 0
    %203 = vmatpush1.bf16.msra.mxu0 %v183
    %204 = vmatprep.subr.bf16.mxu0 0
    %205 = vmatpush1.bf16.msra.mxu0 %v184
    %206 = vmatprep.subr.bf16.mxu0 0
    %207 = vmatpush1.bf16.msra.mxu0 %v185
    %208 = vmatprep.subr.bf16.mxu0 0
    %209 = vmatpush1.bf16.msra.mxu0 %v186
    %210 = vmatprep.subr.bf16.mxu0 0
    %211 = vmatpush1.bf16.msra.mxu0 %v187
    %212 = vmatprep.subr.bf16.mxu0 0
    %213 = vmatpush1.bf16.msra.mxu0 0
    %214 = vmatprep.subr.bf16.mxu0 0
    %215 = vmatpush1.bf16.msra.mxu0 0
    %216 = vmatprep.subr.bf16.mxu0 0
    %217 = vmatpush1.bf16.msra.mxu0 0
    %218 = vmatprep.subr.bf16.mxu0 0
    %219 = vmatpush1.bf16.msra.mxu0 0
    %220 = vmatprep.subr.bf16.mxu0 0
    %221 = vmatpush1.bf16.msra.mxu0 0
    %222 = vmatprep.subr.bf16.mxu0 0
    %223 = vmatpush1.bf16.msra.mxu0 0
    %224 = vmatprep.subr.bf16.mxu0 0
    %225 = vmatpush1.bf16.msra.mxu0 0
    %226 = vmatprep.subr.bf16.mxu0 0
    %227 = vmatpush1.bf16.msra.mxu0 0
    %228 = vmatprep.mubr.bf16.mxu0 0
    %229 = vmatmul.mubr.bf16.gmra.mrb[0].mxu0 %v124
    %v230 = vpop.f32.mrb[0].mxu0
    %v231 = vadd.f32 %v146, %v230
    %v232 = vpop.f32.mrb[0].mxu0
    %v233 = vpop.f32.mrb[0].mxu0
    %v234 = vpop.f32.mrb[0].mxu0
    %235 = vdwg.mxu0
    %v236 = vmax.f32 %v231, 0.0
    %v237 = vpack.c.bf16 %v236, %v236
    %v238 = vld [vmem:[#allocation7] sm:$0xf]
    %v239 = vld [vmem:[#allocation7 + $0x4] sm:$0xf]
    %v240 = vld [vmem:[#allocation7 + $0x8] sm:$0xf]
    %v241 = vld [vmem:[#allocation7 + $0xc] sm:$0xf]
    %v242 = vld [vmem:[#allocation7 + $0x10] sm:$0xf]
    %v243 = vld [vmem:[#allocation7 + $0x14] sm:$0xf]
    %v244 = vld [vmem:[#allocation7 + $0x18] sm:$0xf]
    %v245 = vld [vmem:[#allocation7 + $0x1c] sm:$0xf]
    %v246 = vld [vmem:[#allocation7 + $0x20] sm:$0xf]
    %v247 = vld [vmem:[#allocation7 + $0x24] sm:$0xf]
    %v248 = vld [vmem:[#allocation7 + $0x28] sm:$0xf]
    %v249 = vld [vmem:[#allocation7 + $0x2c] sm:$0xf]
    %v250 = vld [vmem:[#allocation7 + $0x30] sm:$0xf]
    %v251 = vld [vmem:[#allocation7 + $0x34] sm:$0xf]
    %v252 = vld [vmem:[#allocation7 + $0x38] sm:$0xf]
    %v253 = vld [vmem:[#allocation7 + $0x3c] sm:$0xf]
    %v254 = vld [vmem:[%s6] sm:$0x1]
    %v256 = vlaneseq
    %v257 = vshrl.u32 %v256, 7
    %v258 = vsub.s32 0, %v257
    %v259 = vrot.slane %v254, %v258
    %v277 = vunpack.c.l.b16 %v238
    %v278 = vunpack.c.l.b16 %v239
    %v279 = vunpack.c.l.b16 %v240
    %v280 = vunpack.c.l.b16 %v241
    %v281 = vunpack.c.l.b16 %v242
    %v282 = vunpack.c.l.b16 %v243
    %v283 = vunpack.c.l.b16 %v244
    %v284 = vunpack.c.l.b16 %v245
    %v285 = vunpack.c.l.b16 %v246
    %v286 = vunpack.c.l.b16 %v247
    %v287 = vunpack.c.l.b16 %v248
    %v288 = vunpack.c.l.b16 %v249
    %v289 = vunpack.c.l.b16 %v250
    %v290 = vunpack.c.l.b16 %v251
    %v291 = vunpack.c.l.b16 %v252
    %v292 = vunpack.c.l.b16 %v253
    %v293 = vpack.c.b16 %v278, %v277
    %v294 = vpack.c.b16 %v280, %v279
    %v295 = vpack.c.b16 %v282, %v281
    %v296 = vpack.c.b16 %v284, %v283
    %v297 = vpack.c.b16 %v286, %v285
    %v298 = vpack.c.b16 %v288, %v287
    %v299 = vpack.c.b16 %v290, %v289
    %v300 = vpack.c.b16 %v292, %v291
    %309 = vmatprep.subr.bf16.mxu0 0
    %310 = vmatpush1.bf16.msra.mxu0 %v293
    %311 = vmatprep.subr.bf16.mxu0 0
    %312 = vmatpush1.bf16.msra.mxu0 %v294
    %313 = vmatprep.subr.bf16.mxu0 0
    %314 = vmatpush1.bf16.msra.mxu0 %v295
    %315 = vmatprep.subr.bf16.mxu0 0
    %316 = vmatpush1.bf16.msra.mxu0 %v296
    %317 = vmatprep.subr.bf16.mxu0 0
    %318 = vmatpush1.bf16.msra.mxu0 %v297
    %319 = vmatprep.subr.bf16.mxu0 0
    %320 = vmatpush1.bf16.msra.mxu0 %v298
    %321 = vmatprep.subr.bf16.mxu0 0
    %322 = vmatpush1.bf16.msra.mxu0 %v299
    %323 = vmatprep.subr.bf16.mxu0 0
    %324 = vmatpush1.bf16.msra.mxu0 %v300
    %325 = vmatprep.subr.bf16.mxu0 0
    %326 = vmatpush1.bf16.msra.mxu0 0
    %327 = vmatprep.subr.bf16.mxu0 0
    %328 = vmatpush1.bf16.msra.mxu0 0
    %329 = vmatprep.subr.bf16.mxu0 0
    %330 = vmatpush1.bf16.msra.mxu0 0
    %331 = vmatprep.subr.bf16.mxu0 0
    %332 = vmatpush1.bf16.msra.mxu0 0
    %333 = vmatprep.subr.bf16.mxu0 0
    %334 = vmatpush1.bf16.msra.mxu0 0
    %335 = vmatprep.subr.bf16.mxu0 0
    %336 = vmatpush1.bf16.msra.mxu0 0
    %337 = vmatprep.subr.bf16.mxu0 0
    %338 = vmatpush1.bf16.msra.mxu0 0
    %339 = vmatprep.subr.bf16.mxu0 0
    %340 = vmatpush1.bf16.msra.mxu0 0
    %341 = vmatprep.mubr.bf16.mxu0 0
    %342 = vmatmul.mubr.bf16.gmra.mrb[0].mxu0 %v237
    %v343 = vpop.f32.mrb[0].mxu0
    %v344 = vadd.f32 %v259, %v343
    %v345 = vpop.f32.mrb[0].mxu0
    %v346 = vpop.f32.mrb[0].mxu0
    %v347 = vpop.f32.mrb[0].mxu0
    %348 = vdwg.mxu0
    %v349 = vmax.f32 %v344, 0.0
    %v350 = vpack.c.bf16 %v349, %v349
    %v351 = vld [vmem:[#allocation8] sm:$0xf]
    %v352 = vld [vmem:[#allocation8 + $0x4] sm:$0xf]
    %v353 = vld [vmem:[#allocation8 + $0x8] sm:$0xf]
    %v354 = vld [vmem:[#allocation8 + $0xc] sm:$0xf]
    %v355 = vld [vmem:[#allocation8 + $0x10] sm:$0xf]
    %v356 = vld [vmem:[#allocation8 + $0x14] sm:$0xf]
    %v357 = vld [vmem:[#allocation8 + $0x18] sm:$0xf]
    %v358 = vld [vmem:[#allocation8 + $0x1c] sm:$0xf]
    %v359 = vld [vmem:[#allocation8 + $0x20] sm:$0xf]
    %v360 = vld [vmem:[#allocation8 + $0x24] sm:$0xf]
    %v361 = vld [vmem:[#allocation8 + $0x28] sm:$0xf]
    %v362 = vld [vmem:[#allocation8 + $0x2c] sm:$0xf]
    %v363 = vld [vmem:[#allocation8 + $0x30] sm:$0xf]
    %v364 = vld [vmem:[#allocation8 + $0x34] sm:$0xf]
    %v365 = vld [vmem:[#allocation8 + $0x38] sm:$0xf]
    %v366 = vld [vmem:[#allocation8 + $0x3c] sm:$0xf]
    %v367 = vld [vmem:[%s8] sm:$0x1]
    %v369 = vlaneseq
    %v370 = vshrl.u32 %v369, 7
    %v371 = vsub.s32 0, %v370
    %v372 = vrot.slane %v367, %v371
    %v390 = vunpack.c.l.b16 %v351
    %v391 = vunpack.c.l.b16 %v352
    %v392 = vunpack.c.l.b16 %v353
    %v393 = vunpack.c.l.b16 %v354
    %v394 = vunpack.c.l.b16 %v355
    %v395 = vunpack.c.l.b16 %v356
    %v396 = vunpack.c.l.b16 %v357
    %v397 = vunpack.c.l.b16 %v358
    %v398 = vunpack.c.l.b16 %v359
    %v399 = vunpack.c.l.b16 %v360
    %v400 = vunpack.c.l.b16 %v361
    %v401 = vunpack.c.l.b16 %v362
    %v402 = vunpack.c.l.b16 %v363
    %v403 = vunpack.c.l.b16 %v364
    %v404 = vunpack.c.l.b16 %v365
    %v405 = vunpack.c.l.b16 %v366
    %v406 = vpack.c.b16 %v391, %v390
    %v407 = vpack.c.b16 %v393, %v392
    %v408 = vpack.c.b16 %v395, %v394
    %v409 = vpack.c.b16 %v397, %v396
    %v410 = vpack.c.b16 %v399, %v398
    %v411 = vpack.c.b16 %v401, %v400
    %v412 = vpack.c.b16 %v403, %v402
    %v413 = vpack.c.b16 %v405, %v404
    %422 = vmatprep.subr.bf16.mxu0 0
    %423 = vmatpush1.bf16.msra.mxu0 %v406
    %424 = vmatprep.subr.bf16.mxu0 0
    %425 = vmatpush1.bf16.msra.mxu0 %v407
    %426 = vmatprep.subr.bf16.mxu0 0
    %427 = vmatpush1.bf16.msra.mxu0 %v408
    %428 = vmatprep.subr.bf16.mxu0 0
    %429 = vmatpush1.bf16.msra.mxu0 %v409
    %430 = vmatprep.subr.bf16.mxu0 0
    %431 = vmatpush1.bf16.msra.mxu0 %v410
    %432 = vmatprep.subr.bf16.mxu0 0
    %433 = vmatpush1.bf16.msra.mxu0 %v411
    %434 = vmatprep.subr.bf16.mxu0 0
    %435 = vmatpush1.bf16.msra.mxu0 %v412
    %436 = vmatprep.subr.bf16.mxu0 0
    %437 = vmatpush1.bf16.msra.mxu0 %v413
    %438 = vmatprep.subr.bf16.mxu0 0
    %439 = vmatpush1.bf16.msra.mxu0 0
    %440 = vmatprep.subr.bf16.mxu0 0
    %441 = vmatpush1.bf16.msra.mxu0 0
    %442 = vmatprep.subr.bf16.mxu0 0
    %443 = vmatpush1.bf16.msra.mxu0 0
    %444 = vmatprep.subr.bf16.mxu0 0
    %445 = vmatpush1.bf16.msra.mxu0 0
    %446 = vmatprep.subr.bf16.mxu0 0
    %447 = vmatpush1.bf16.msra.mxu0 0
    %448 = vmatprep.subr.bf16.mxu0 0
    %449 = vmatpush1.bf16.msra.mxu0 0
    %450 = vmatprep.subr.bf16.mxu0 0
    %451 = vmatpush1.bf16.msra.mxu0 0
    %452 = vmatprep.subr.bf16.mxu0 0
    %453 = vmatpush1.bf16.msra.mxu0 0
    %454 = vmatprep.mubr.bf16.mxu0 0
    %455 = vmatmul.mubr.bf16.gmra.mrb[0].mxu0 %v350
    %v456 = vpop.f32.mrb[0].mxu0
    %v457 = vadd.f32 %v372, %v456
    %v458 = vpop.f32.mrb[0].mxu0
    %v459 = vpop.f32.mrb[0].mxu0
    %v460 = vpop.f32.mrb[0].mxu0
    %461 = vdwg.mxu0
    %v462 = vmax.f32 %v457, 0.0
    %463 = vst [vmem:[#allocation10] sm:$0xff] %v462
    // Predicated region
    $region54: #{tpu_custom_call.1} parent=1 // pred_check
      _
    $region55: #{tpu_custom_call.1} parent=1 // pred_check_branch
      %465 = sbr.rel (0) target = $region57
    $region56: #{tpu_custom_call.1} parent=1 // pred_region
      %s467 = ssub.s32 128, 128
      %468 = vsyncadd [#allocation4], %s467
      %s470 = sshll.u32 [#allocation10], 4
      %s471 = int_to_ptr.vmem [resolvable:$true] %s470
      %473 = dma.vmem_to_hbm [thread:$0]  %s471, 128, %s9, [#allocation4]
    $region57: #{tpu_custom_call.1} parent=1 // pred_fallthru
      _
    // Predicated region
    $region58: #{tpu_custom_call.1} parent=1 // pred_check
      _
    $region59: #{tpu_custom_call.1} parent=1 // pred_check_branch
      %475 = sbr.rel (0) target = $region61
    $region60: #{tpu_custom_call.1} parent=1 // pred_region
      %476 = dma.done [#allocation4], 128
    $region61: #{tpu_custom_call.1} parent=1 // pred_fallthru
      _
    %477 = vsyncpa [#allocation3], 1
    %478 = vsyncpa [#allocation6], 1
    %479 = vsyncpa [#allocation9], 1
    %480 = vsyncpa [#allocation4], 1

</llo_original>
